<compile_context>
chip_gen: v7x
topology: tpu7x:2x2x1
jax: 0.10.0
libtpu: 0.0.40
codegen_flags: <defaults>
</compile_context>

<pallas_src>
import functools

import jax
import jax.numpy as jnp
import numpy as np
from jax.experimental import pallas as pl
from jax.experimental.pallas import tpu as pltpu

LANE = 128


def _round_up(v, m):
    return ((v + m - 1) // m) * m


# --------------------------------------------------------------------------- layout
def make_param_layout(x_dim, h_dim, z_dim, psi_dim):
    """Static layout constants for the packed input / parameter / output slabs."""
    H, Z, X, PSI = h_dim, z_dim, x_dim, psi_dim
    # TODO(synk): dims larger than one 128-lane tile would need a multi-tile layout.
    assert Z + X + PSI <= LANE, "eps|x|psi must fit in one 128-lane tile"
    assert H <= LANE and Z <= LANE and X <= LANE

    # input slab lane offsets: [eps | x | psi | 0]
    o_eps, o_x, o_psi = 0, Z, Z + X

    # parameter slab column regions (all 128-aligned)
    c_encw = 0                       # [0:128,  c : c+384]  fused encoder weight
    c_headsw = c_encw + 3 * LANE     # [0:256,  c : c+512]  block-diagonal heads weight
    c_genzw = c_headsw + 4 * LANE    # [0:128,  c : c+128]  z_sample -> gen hidden
    c_gmw = c_genzw + LANE           # [0:128,  c : c+128]  gen hidden -> logits
    c_bias = c_gmw + LANE            # row 0:   b_enc(384) | b_heads(512) | b_gm(128)
    C = c_bias + 3 * LANE + 4 * LANE + LANE
    R = 2 * LANE
    return dict(H=H, Z=Z, X=X, PSI=PSI, R=R, C=C,
                o_eps=o_eps, o_x=o_x, o_psi=o_psi,
                c_encw=c_encw, c_headsw=c_headsw, c_genzw=c_genzw,
                c_gmw=c_gmw, c_bias=c_bias)


def pack_params(p, L):
    """Build the single f32 parameter slab once (outside the hot path)."""
    H, Z, X, PSI = L["H"], L["Z"], L["X"], L["PSI"]
    o_x, o_psi = L["o_x"], L["o_psi"]
    f32 = jnp.float32

    # fused encoder weight [128, 3*128]: inf | prior | gen-psi, x folded into inf block
    w_enc = jnp.zeros((LANE, 3 * LANE), f32)
    w_enc = w_enc.at[o_x:o_x + X, 0:H].set(p["w_inf_x"])
    w_enc = w_enc.at[o_psi:o_psi + PSI, 0:H].set(p["w_inf_psi"])
    w_enc = w_enc.at[o_psi:o_psi + PSI, LANE:LANE + H].set(p["w_pr"])
    w_enc = w_enc.at[o_psi:o_psi + PSI, 2 * LANE:2 * LANE + H].set(p["w_gen_psi"])
    b_enc = jnp.zeros((1, 3 * LANE), f32)
    b_enc = b_enc.at[:, 0:H].set(p["b_inf"])
    b_enc = b_enc.at[:, LANE:LANE + H].set(p["b_pr"])
    b_enc = b_enc.at[:, 2 * LANE:2 * LANE + H].set(p["b_gen"])

    # block-diagonal heads weight [256, 4*128]: z_mean | z_logvar | z_mean_pr | z_logvar_pr
    w_heads = jnp.zeros((2 * LANE, 4 * LANE), f32)
    w_heads = w_heads.at[0:H, 0:Z].set(p["w_im"])
    w_heads = w_heads.at[0:H, LANE:LANE + Z].set(p["w_ilv"])
    w_heads = w_heads.at[LANE:LANE + H, 2 * LANE:2 * LANE + Z].set(p["w_pm"])
    w_heads = w_heads.at[LANE:LANE + H, 3 * LANE:3 * LANE + Z].set(p["w_plv"])
    b_heads = jnp.zeros((1, 4 * LANE), f32)
    b_heads = b_heads.at[:, 0:Z].set(p["b_im"])
    b_heads = b_heads.at[:, LANE:LANE + Z].set(p["b_ilv"])
    b_heads = b_heads.at[:, 2 * LANE:2 * LANE + Z].set(p["b_pm"])
    b_heads = b_heads.at[:, 3 * LANE:3 * LANE + Z].set(p["b_plv"])

    # z_sample -> gen hidden  (rows beyond Z zero => garbage z_sample lanes are killed)
    w_genz = jnp.zeros((LANE, LANE), f32).at[0:Z, 0:H].set(p["w_gen_z"])

    # gen hidden -> logits; output columns placed at Z..Z+X-1 so they line up with the
    # x lanes of the input slab (x * logits needs no lane shift).
    w_gm = jnp.zeros((LANE, LANE), f32).at[0:H, Z:Z + X].set(p["w_gm"])
    b_gm = jnp.zeros((1, LANE), f32).at[:, Z:Z + X].set(p["b_gm"])

    slab = jnp.zeros((L["R"], L["C"]), f32)
    slab = slab.at[0:LANE, L["c_encw"]:L["c_encw"] + 3 * LANE].set(w_enc)
    slab = slab.at[0:2 * LANE, L["c_headsw"]:L["c_headsw"] + 4 * LANE].set(w_heads)
    slab = slab.at[0:LANE, L["c_genzw"]:L["c_genzw"] + LANE].set(w_genz)
    slab = slab.at[0:LANE, L["c_gmw"]:L["c_gmw"] + LANE].set(w_gm)
    cb = L["c_bias"]
    slab = slab.at[0:1, cb:cb + 3 * LANE].set(b_enc)
    slab = slab.at[0:1, cb + 3 * LANE:cb + 7 * LANE].set(b_heads)
    slab = slab.at[0:1, cb + 7 * LANE:cb + 8 * LANE].set(b_gm)
    return slab


# --------------------------------------------------------------------------- kernel
def _vmb_kernel(in_ref, p_ref, out_ref, *, L):
    Z, X = L["Z"], L["X"]
    f32 = jnp.float32

    xin = in_ref[...]                                   # [bt, 128] = eps | x | psi | 0

    # carve the parameter slab (all slices 128-lane / 8-sublane aligned -> free views)
    w_enc = p_ref[0:LANE, L["c_encw"]:L["c_encw"] + 3 * LANE]          # [128, 384]
    w_heads = p_ref[0:2 * LANE, L["c_headsw"]:L["c_headsw"] + 4 * LANE]  # [256, 512]
    w_genz = p_ref[0:LANE, L["c_genzw"]:L["c_genzw"] + LANE]           # [128, 128]
    w_gm = p_ref[0:LANE, L["c_gmw"]:L["c_gmw"] + LANE]                 # [128, 128]
    cb = L["c_bias"]
    b_enc = p_ref[0:1, cb:cb + 3 * LANE]                               # [1, 384]
    b_heads = p_ref[0:1, cb + 3 * LANE:cb + 7 * LANE]                  # [1, 512]
    b_gm = p_ref[0:1, cb + 7 * LANE:cb + 8 * LANE]                     # [1, 128]

    # ---- one MXU pass for all three encoders (x folded into the inf block) ----
    enc = jnp.dot(xin, w_enc, preferred_element_type=f32) + b_enc      # [bt, 384]
    h2 = jnp.maximum(enc[:, 0:2 * LANE], 0.0)                          # inf-enc | prior-enc

    # ---- one block-diagonal MXU pass for all four mean/logvar heads ----
    heads = jnp.dot(h2, w_heads, preferred_element_type=f32) + b_heads  # [bt, 512]
    zm = heads[:, 0:LANE]                # z_mean       (real lanes 0..Z-1, rest exact 0)
    zlv = heads[:, LANE:2 * LANE]        # z_logvar
    zmp = heads[:, 2 * LANE:3 * LANE]    # z_mean_prior
    zlvp = heads[:, 3 * LANE:4 * LANE]   # z_logvar_prior

    # ---- reparameterized sample: eps * exp(0.5*logvar) + mean (eps sits in lanes 0..Z-1) ----
    std = jnp.exp(0.5 * zlv)
    z_sample = xin * std + zm            # valid at lanes 0..Z-1; garbage elsewhere (unused)

    # ---- generative path (psi contribution already in enc block 2) ----
    x_enc = jnp.maximum(
        enc[:, 2 * LANE:3 * LANE]
        + jnp.dot(z_sample, w_genz, preferred_element_type=f32), 0.0)  # [bt, 128]
    logits = jnp.dot(x_enc, w_gm, preferred_element_type=f32) + b_gm   # real at lanes Z..Z+X-1

    # ---- KL(q || p); padded lanes contribute exactly zero, so no mask needed ----
    kld_elem = (zlvp - zlv
                + (std * std + jnp.square(zm - zmp)) * jnp.exp(-zlvp)
                - 1.0)
    kld = 0.5 * jnp.sum(kld_elem, axis=1, keepdims=True)               # [bt, 1]

    # ---- Bernoulli NLL from logits (stable softplus form), masked to the X payload lanes ----
    softplus = jnp.maximum(logits, 0.0) + jnp.log1p(jnp.exp(-jnp.abs(logits)))
    lane = jax.lax.broadcasted_iota(jnp.int32, (1, LANE), 1)
    valid = jnp.logical_and(lane >= Z, lane < Z + X)
    nll = jnp.sum(jnp.where(valid, softplus - xin * logits, 0.0),
                  axis=1, keepdims=True)                               # [bt, 1]

    elbo = -nll - kld                                                  # [bt, 1]

    # ---- lane-dense, 128-aligned output stores (no concatenate, no masked vst) ----
    out_ref[:, 0:LANE] = z_sample
    out_ref[:, LANE:2 * LANE] = jax.nn.sigmoid(logits)
    out_ref[:, 2 * LANE:3 * LANE] = jnp.broadcast_to(elbo, (elbo.shape[0], LANE))


# --------------------------------------------------------------------------- wrapper
def variational_model_forward(psi_t, x_t, eps, param_slab, layout, *, batch_tile=2048):
    """Runs the whole VariationalModelBase.forward hot path in a single Pallas kernel."""
    Z, X, PSI = layout["Z"], layout["X"], layout["PSI"]
    R, C = param_slab.shape
    B = psi_t.shape[0]
    IN_C, OUT_C = LANE, 3 * LANE

    # one lane-dense input slab [eps | x | psi | 0]  -> a single input DMA per tile
    payload = jnp.concatenate([eps, x_t, psi_t], axis=1).astype(jnp.float32)
    in_slab = jnp.pad(payload, ((0, 0), (0, IN_C - payload.shape[1])))

    # batch tile: multiple of 8; split the grid >=2 ways when the batch allows so the
    # "parallel" axis shards across both TensorCores on v7x.
    bt = max(8, _round_up(min(batch_tile, max(8, -(-B // 2))), 8))
    B_pad = _round_up(B, bt)
    if B_pad != B:
        in_slab = jnp.pad(in_slab, ((0, B_pad - B), (0, 0)))

    grid = (B_pad // bt,)
    kernel = functools.partial(_vmb_kernel, L=layout)

    out = pl.pallas_call(
        kernel,
        out_shape=jax.ShapeDtypeStruct((B_pad, OUT_C), jnp.float32),
        grid=grid,
        in_specs=[
            pl.BlockSpec((bt, IN_C), lambda i: (i, 0)),
            # constant block index -> parameter slab stays resident in VMEM across steps
            pl.BlockSpec((R, C), lambda i: (0, 0)),
        ],
        out_specs=pl.BlockSpec((bt, OUT_C), lambda i: (i, 0)),
        compiler_params=pltpu.CompilerParams(
            dimension_semantics=("parallel",),          # shards batch across TCs on v7x
            vmem_limit_bytes=64 * 1024 * 1024,          # covers bt<=2048 double-buffered IO
        ),
    )(in_slab, param_slab)

    z_sample = out[:B, 0:Z]
    x_mean = out[:B, LANE + Z:LANE + Z + X]
    elbo = out[:B, 2 * LANE]
    return z_sample, x_mean, elbo


# --------------------------------------------------------------------------- reference
def _reference_forward(psi_t, x_t, eps, p):
    """Pure-JAX reference matching the PyTorch semantics (incl. its 1e-8 epsilons)."""
    z_enc = jax.nn.relu(psi_t @ p["w_inf_psi"] + x_t @ p["w_inf_x"] + p["b_inf"])
    z_mean = z_enc @ p["w_im"] + p["b_im"]
    z_logvar = z_enc @ p["w_ilv"] + p["b_ilv"]
    z_enc_pr = jax.nn.relu(psi_t @ p["w_pr"] + p["b_pr"])
    z_mean_pr = z_enc_pr @ p["w_pm"] + p["b_pm"]
    z_logvar_pr = z_enc_pr @ p["w_plv"] + p["b_plv"]
    z_sample = eps * jnp.exp(0.5 * z_logvar) + z_mean
    x_enc = jax.nn.relu(psi_t @ p["w_gen_psi"] + z_sample @ p["w_gen_z"] + p["b_gen"])
    x_mean = jax.nn.sigmoid(x_enc @ p["w_gm"] + p["b_gm"])
    kld_elem = (
        z_logvar_pr - z_logvar
        + (jnp.exp(z_logvar) + (z_mean - z_mean_pr) ** 2) / (jnp.exp(z_logvar_pr) + 1e-8)
        - 1.0
    )
    kld = 0.5 * jnp.sum(kld_elem, axis=1)
    nll = -jnp.sum(
        x_t * jnp.log(x_mean + 1e-8) + (1 - x_t) * jnp.log(1 - x_mean + 1e-8), axis=1
    )
    return z_sample, x_mean, -nll - kld


def _init_params(key, x_dim, h_dim, z_dim, psi_dim, stdv=0.1):
    """Deterministic init matching reset_parameters(stdv=0.1); weights stored [in, out]."""
    ks = jax.random.split(key, 16)

    def n(k, shape):
        return (stdv * jax.random.normal(k, shape)).astype(jnp.float32)

    return {
        "w_inf_psi": n(ks[0], (psi_dim, h_dim)),
        "w_inf_x": n(ks[1], (x_dim, h_dim)),
        "b_inf": n(ks[2], (1, h_dim)),
        "w_im": n(ks[3], (h_dim, z_dim)),
        "b_im": n(ks[4], (1, z_dim)),
        "w_ilv": n(ks[5], (h_dim, z_dim)),
        "b_ilv": n(ks[6], (1, z_dim)),
        "w_pr": n(ks[7], (psi_dim, h_dim)),
        "b_pr": n(ks[8], (1, h_dim)),
        "w_pm": n(ks[9], (h_dim, z_dim)),
        "b_pm": n(ks[10], (1, z_dim)),
        "w_plv": n(ks[11], (h_dim, z_dim)),
        "b_plv": n(ks[12], (1, z_dim)),
        "w_gen_psi": n(ks[13], (psi_dim, h_dim)),
        "w_gen_z": n(ks[14], (z_dim, h_dim)),
        "b_gen": n(ks[15], (1, h_dim)),
        "w_gm": n(jax.random.fold_in(key, 100), (h_dim, x_dim)),
        "b_gm": n(jax.random.fold_in(key, 101), (1, x_dim)),
    }


if __name__ == "__main__":
    B, x_dim, h_dim, z_dim, psi_dim = 8, 16, 32, 8, 16

    key = jax.random.PRNGKey(0)
    k_psi, k_x, k_eps, k_par = jax.random.split(key, 4)

    psi_t = jax.random.normal(k_psi, (B, psi_dim), dtype=jnp.float32)
    # x is treated as Bernoulli data -> keep it in [0, 1]
    x_t = jax.random.uniform(k_x, (B, x_dim), dtype=jnp.float32)
    eps = jax.random.normal(k_eps, (B, z_dim), dtype=jnp.float32)

    params = _init_params(k_par, x_dim, h_dim, z_dim, psi_dim)
    layout = make_param_layout(x_dim, h_dim, z_dim, psi_dim)
    param_slab = pack_params(params, layout)   # packed once, reused every call

    z_sample, x_mean, elbo = variational_model_forward(psi_t, x_t, eps, param_slab, layout)
    jax.block_until_ready((z_sample, x_mean, elbo))

    # correctness check against pure-JAX reference (kernel uses the logits/softplus NLL
    # and exp(-logvar) KL form -> differs from the epsilon-padded reference by ~1e-6)
    z_ref, xm_ref, elbo_ref = _reference_forward(psi_t, x_t, eps, params)
    np.testing.assert_allclose(np.asarray(z_sample), np.asarray(z_ref), atol=1e-5, rtol=1e-5)
    np.testing.assert_allclose(np.asarray(x_mean), np.asarray(xm_ref), atol=1e-5, rtol=1e-5)
    np.testing.assert_allclose(np.asarray(elbo), np.asarray(elbo_ref), atol=2e-4, rtol=1e-4)

    print("KERNEL_OK")
</pallas_src>

<mosaic_0001>
module attributes {stable_mosaic.version = 11 : i64} {
  func.func @_vmb_kernel(%arg0: i32, %arg1: memref<8x128xf32, #tpu.memory_space<vmem>>, %arg2: memref<256x2176xf32, #tpu.memory_space<vmem>>, %arg3: memref<8x384xf32, #tpu.memory_space<vmem>>) attributes {dimension_semantics = [#tpu.dimension_semantics<parallel>], iteration_bounds = array<i64: 1>, scalar_prefetch = 0 : i64, scratch_operands = 0 : i64, tpu.core_type = #tpu.core_type<tc>, window_params = [{transform_indices = @transform_0, window_bounds = array<i64: 8, 128>}, {pipeline_mode = #tpu.pipeline_mode<synchronous>, transform_indices = @transform_1, window_bounds = array<i64: 256, 2176>}, {transform_indices = @transform_2, window_bounds = array<i64: 8, 384>}]} {
    %c0 = arith.constant 0 : index
    %c0_0 = arith.constant 0 : index
    %0 = vector.load %arg1[%c0, %c0_0] : memref<8x128xf32, #tpu.memory_space<vmem>>, vector<8x128xf32>
    %c0_1 = arith.constant 0 : index
    %c0_2 = arith.constant 0 : index
    %1 = vector.load %arg2[%c0_1, %c0_2] : memref<256x2176xf32, #tpu.memory_space<vmem>>, vector<128x384xf32>
    %c0_3 = arith.constant 0 : index
    %c384 = arith.constant 384 : index
    %2 = vector.load %arg2[%c0_3, %c384] : memref<256x2176xf32, #tpu.memory_space<vmem>>, vector<256x512xf32>
    %c0_4 = arith.constant 0 : index
    %c896 = arith.constant 896 : index
    %3 = vector.load %arg2[%c0_4, %c896] : memref<256x2176xf32, #tpu.memory_space<vmem>>, vector<128x128xf32>
    %c0_5 = arith.constant 0 : index
    %c1024 = arith.constant 1024 : index
    %4 = vector.load %arg2[%c0_5, %c1024] : memref<256x2176xf32, #tpu.memory_space<vmem>>, vector<128x128xf32>
    %c0_6 = arith.constant 0 : index
    %c1152 = arith.constant 1152 : index
    %5 = vector.load %arg2[%c0_6, %c1152] : memref<256x2176xf32, #tpu.memory_space<vmem>>, vector<1x384xf32>
    %c0_7 = arith.constant 0 : index
    %c1536 = arith.constant 1536 : index
    %6 = vector.load %arg2[%c0_7, %c1536] : memref<256x2176xf32, #tpu.memory_space<vmem>>, vector<1x512xf32>
    %c0_8 = arith.constant 0 : index
    %c2048 = arith.constant 2048 : index
    %7 = vector.load %arg2[%c0_8, %c2048] : memref<256x2176xf32, #tpu.memory_space<vmem>>, vector<1x128xf32>
    %cst = arith.constant dense<0.000000e+00> : vector<8x384xf32>
    %8 = tpu.matmul %0, %1, %cst {dimension_numbers = #tpu.dot_dimension_numbers<[1], [0], [0], [1], [0, 0, 1, 1], [], []>} : vector<8x128xf32>, vector<128x384xf32>, vector<8x384xf32> -> vector<8x384xf32>
    %9 = vector.broadcast %5 : vector<1x384xf32> to vector<8x384xf32>
    %10 = arith.addf %8, %9 : vector<8x384xf32>
    %11 = vector.extract_strided_slice %10 {offsets = [0, 0], sizes = [8, 256], strides = [1, 1]} : vector<8x384xf32> to vector<8x256xf32>
    %cst_9 = arith.constant 0.000000e+00 : f32
    %12 = vector.broadcast %cst_9 : f32 to vector<8x256xf32>
    %13 = arith.maximumf %11, %12 : vector<8x256xf32>
    %cst_10 = arith.constant dense<0.000000e+00> : vector<8x512xf32>
    %14 = tpu.matmul %13, %2, %cst_10 {dimension_numbers = #tpu.dot_dimension_numbers<[1], [0], [0], [1], [0, 0, 1, 1], [], []>} : vector<8x256xf32>, vector<256x512xf32>, vector<8x512xf32> -> vector<8x512xf32>
    %15 = vector.broadcast %6 : vector<1x512xf32> to vector<8x512xf32>
    %16 = arith.addf %14, %15 : vector<8x512xf32>
    %17 = vector.extract_strided_slice %16 {offsets = [0, 0], sizes = [8, 128], strides = [1, 1]} : vector<8x512xf32> to vector<8x128xf32>
    %18 = vector.extract_strided_slice %16 {offsets = [0, 128], sizes = [8, 128], strides = [1, 1]} : vector<8x512xf32> to vector<8x128xf32>
    %19 = vector.extract_strided_slice %16 {offsets = [0, 256], sizes = [8, 128], strides = [1, 1]} : vector<8x512xf32> to vector<8x128xf32>
    %20 = vector.extract_strided_slice %16 {offsets = [0, 384], sizes = [8, 128], strides = [1, 1]} : vector<8x512xf32> to vector<8x128xf32>
    %cst_11 = arith.constant 5.000000e-01 : f32
    %21 = vector.broadcast %cst_11 : f32 to vector<8x128xf32>
    %22 = arith.mulf %21, %18 : vector<8x128xf32>
    %23 = math.exp %22 : vector<8x128xf32>
    %24 = arith.mulf %0, %23 : vector<8x128xf32>
    %25 = arith.addf %24, %17 : vector<8x128xf32>
    %26 = vector.extract_strided_slice %10 {offsets = [0, 256], sizes = [8, 128], strides = [1, 1]} : vector<8x384xf32> to vector<8x128xf32>
    %cst_12 = arith.constant dense<0.000000e+00> : vector<8x128xf32>
    %27 = tpu.matmul %25, %3, %cst_12 {dimension_numbers = #tpu.dot_dimension_numbers<[1], [0], [0], [1], [0, 0, 1, 1], [], []>} : vector<8x128xf32>, vector<128x128xf32>, vector<8x128xf32> -> vector<8x128xf32>
    %28 = arith.addf %26, %27 : vector<8x128xf32>
    %cst_13 = arith.constant 0.000000e+00 : f32
    %29 = vector.broadcast %cst_13 : f32 to vector<8x128xf32>
    %30 = arith.maximumf %28, %29 : vector<8x128xf32>
    %cst_14 = arith.constant dense<0.000000e+00> : vector<8x128xf32>
    %31 = tpu.matmul %30, %4, %cst_14 {dimension_numbers = #tpu.dot_dimension_numbers<[1], [0], [0], [1], [0, 0, 1, 1], [], []>} : vector<8x128xf32>, vector<128x128xf32>, vector<8x128xf32> -> vector<8x128xf32>
    %32 = vector.broadcast %7 : vector<1x128xf32> to vector<8x128xf32>
    %33 = arith.addf %31, %32 : vector<8x128xf32>
    %34 = arith.subf %20, %18 : vector<8x128xf32>
    %35 = arith.mulf %23, %23 : vector<8x128xf32>
    %36 = arith.subf %17, %19 : vector<8x128xf32>
    %37 = arith.mulf %36, %36 : vector<8x128xf32>
    %38 = arith.addf %35, %37 : vector<8x128xf32>
    %cst_15 = arith.constant 0.000000e+00 : f32
    %39 = vector.broadcast %cst_15 : f32 to vector<8x128xf32>
    %40 = arith.subf %39, %20 : vector<8x128xf32>
    %41 = math.exp %40 : vector<8x128xf32>
    %42 = arith.mulf %38, %41 : vector<8x128xf32>
    %43 = arith.addf %34, %42 : vector<8x128xf32>
    %cst_16 = arith.constant 1.000000e+00 : f32
    %44 = vector.broadcast %cst_16 : f32 to vector<8x128xf32>
    %45 = arith.subf %43, %44 : vector<8x128xf32>
    %cst_17 = arith.constant dense<0.000000e+00> : vector<8xf32>
    %46 = vector.multi_reduction <add>, %45, %cst_17 [1] : vector<8x128xf32> to vector<8xf32>
    %47 = vector.shape_cast %46 : vector<8xf32> to vector<8x1xf32>
    %cst_18 = arith.constant 5.000000e-01 : f32
    %48 = vector.broadcast %cst_18 : f32 to vector<8x1xf32>
    %49 = arith.mulf %48, %47 : vector<8x1xf32>
    %cst_19 = arith.constant 0.000000e+00 : f32
    %50 = vector.broadcast %cst_19 : f32 to vector<8x128xf32>
    %51 = arith.maximumf %33, %50 : vector<8x128xf32>
    %52 = math.absf %33 : vector<8x128xf32>
    %cst_20 = arith.constant 0.000000e+00 : f32
    %53 = vector.broadcast %cst_20 : f32 to vector<8x128xf32>
    %54 = arith.subf %53, %52 : vector<8x128xf32>
    %55 = math.exp %54 : vector<8x128xf32>
    %56 = math.log1p %55 : vector<8x128xf32>
    %57 = arith.addf %51, %56 : vector<8x128xf32>
    %58 = tpu.iota {dimensions = array<i32: 1>} : vector<1x128xi32>
    %c8_i32 = arith.constant 8 : i32
    %59 = vector.broadcast %c8_i32 : i32 to vector<1x128xi32>
    %60 = arith.cmpi sge, %58, %59 : vector<1x128xi32>
    %c24_i32 = arith.constant 24 : i32
    %61 = vector.broadcast %c24_i32 : i32 to vector<1x128xi32>
    %62 = arith.cmpi slt, %58, %61 : vector<1x128xi32>
    %63 = arith.andi %60, %62 : vector<1x128xi1>
    %64 = arith.mulf %0, %33 : vector<8x128xf32>
    %65 = arith.subf %57, %64 : vector<8x128xf32>
    %cst_21 = arith.constant 0.000000e+00 : f32
    %66 = vector.shape_cast %63 : vector<1x128xi1> to vector<1x128xi1>
    %67 = vector.broadcast %66 : vector<1x128xi1> to vector<8x128xi1>
    %68 = vector.broadcast %cst_21 : f32 to vector<8x128xf32>
    %69 = arith.select %67, %65, %68 : vector<8x128xi1>, vector<8x128xf32>
    %cst_22 = arith.constant dense<0.000000e+00> : vector<8xf32>
    %70 = vector.multi_reduction <add>, %69, %cst_22 [1] : vector<8x128xf32> to vector<8xf32>
    %71 = vector.shape_cast %70 : vector<8xf32> to vector<8x1xf32>
    %cst_23 = arith.constant 0.000000e+00 : f32
    %72 = vector.broadcast %cst_23 : f32 to vector<8x1xf32>
    %73 = arith.subf %72, %71 : vector<8x1xf32>
    %74 = arith.subf %73, %49 : vector<8x1xf32>
    %c0_24 = arith.constant 0 : index
    %c0_25 = arith.constant 0 : index
    %75 = vector.load %arg3[%c0_24, %c0_25] : memref<8x384xf32, #tpu.memory_space<vmem>>, vector<8x128xf32>
    tpu.vector_store %arg3[%c0_24, %c0_25], %25 {strides = array<i32>} : memref<8x384xf32, #tpu.memory_space<vmem>>, vector<8x128xf32>,
    %76 = arith.negf %33 : vector<8x128xf32>
    %77 = math.exp %76 : vector<8x128xf32>
    %cst_26 = arith.constant 1.000000e+00 : f32
    %78 = vector.broadcast %cst_26 : f32 to vector<8x128xf32>
    %79 = arith.addf %78, %77 : vector<8x128xf32>
    %80 = arith.divf %78, %79 : vector<8x128xf32>
    %c0_27 = arith.constant 0 : index
    %c128 = arith.constant 128 : index
    %81 = vector.load %arg3[%c0_27, %c128] : memref<8x384xf32, #tpu.memory_space<vmem>>, vector<8x128xf32>
    tpu.vector_store %arg3[%c0_27, %c128], %80 {strides = array<i32>} : memref<8x384xf32, #tpu.memory_space<vmem>>, vector<8x128xf32>,
    %82 = vector.shape_cast %74 : vector<8x1xf32> to vector<8x1xf32>
    %83 = vector.broadcast %82 : vector<8x1xf32> to vector<8x128xf32>
    %c0_28 = arith.constant 0 : index
    %c256 = arith.constant 256 : index
    %84 = vector.load %arg3[%c0_28, %c256] : memref<8x384xf32, #tpu.memory_space<vmem>>, vector<8x128xf32>
    tpu.vector_store %arg3[%c0_28, %c256], %83 {strides = array<i32>} : memref<8x384xf32, #tpu.memory_space<vmem>>, vector<8x128xf32>,
    return
  }
  func.func @transform_0(%arg0: i32) -> (i32, i32) {
    %c0_i32 = arith.constant 0 : i32
    %c0_i32_0 = arith.constant 0 : i32
    return %arg0, %c0_i32 : i32, i32
  }
  func.func @transform_1(%arg0: i32) -> (i32, i32) {
    %c0_i32 = arith.constant 0 : i32
    %c0_i32_0 = arith.constant 0 : i32
    %c0_i32_1 = arith.constant 0 : i32
    return %c0_i32, %c0_i32_0 : i32, i32
  }
  func.func @transform_2(%arg0: i32) -> (i32, i32) {
    %c0_i32 = arith.constant 0 : i32
    %c0_i32_0 = arith.constant 0 : i32
    return %arg0, %c0_i32 : i32, i32
  }
}

</mosaic_0001>

<llo_original>
// kernel: tpu_custom_call.1
$region0: #{tpu_custom_call.1}
  #allocation0 [shape = 'u32[]', space=smem, size = 0x4, offset = 0x4, fixed_abs, tag = 'smem constant byte address 0x4 - core index']
  #allocation1 [shape = 'u32[144,128]{1,0:T(1,128)}', space=vmem, size = 0x12000, scoped, tag = 'internal scratch']
  %s0 = inlined_call_operand.hbm [shape: f32[8,128], index: 0, kind: input, shape index: {}]
  %s1 = inlined_call_operand.hbm [shape: f32[256,2176], index: 1, kind: input, shape index: {}]
  %s2 = inlined_call_operand.hbm [shape: f32[8,384], index: 2, kind: output, shape index: {}]
  %s3 = sld [smem:[#allocation0]]
  $region26: #{tpu_custom_call.1} parent=0
    _
  %s5 = ssub.s32 1, %s3
  %s6 = scalar_select 0, %s5, %s3
  $region1: #{tpu_custom_call.1} parent=0
    #allocation2 [shape = 'u8[4096]{0}', space=vmem, size = 0x1000, scoped, tag = 'input window, operand 0, single buffered']
    #allocation3 [shape = 's32[1]{0}', space=sflag, size = 0x4, scoped, tag = 'scoped memory for tpu_custom_call.1']
    #allocation4 [shape = 's32[1]{0}', space=sflag, size = 0x4, scoped, tag = 'scoped memory for tpu_custom_call.1']
    #allocation5 [shape = 'u8[2228224]{0}', space=vmem, size = 0x220000, scoped, tag = 'input window, operand 1, single buffered']
    #allocation6 [shape = 's32[1]{0}', space=sflag, size = 0x4, scoped, tag = 'scoped memory for tpu_custom_call.1']
    #allocation7 [shape = 'u8[12288]{0}', space=vmem, size = 0x3000, scoped, tag = 'output window, operand 0, single buffered']
    %7 = vsyncpa [#allocation3], 0
    %8 = vsyncpa [#allocation6], 0
    %9 = vsyncpa [#allocation4], 0
    // Predicated region
    $region2: #{tpu_custom_call.1} parent=1 // pred_check
      _
    $region3: #{tpu_custom_call.1} parent=1 // pred_check_branch
      %11 = sbr.rel (0) target = $region5
    $region4: #{tpu_custom_call.1} parent=1 // pred_region
      %s13 = ssub.s32 128, 128
      %14 = vsyncadd [#allocation3], %s13
      %s16 = sshll.u32 [#allocation2], 4
      %s17 = int_to_ptr.vmem [resolvable:$true] %s16
      %19 = dma.hbm_to_vmem [thread:$0]  %s0, 128, %s17, [#allocation3]
    $region5: #{tpu_custom_call.1} parent=1 // pred_fallthru
      _
    // Predicated region
    $region6: #{tpu_custom_call.1} parent=1 // pred_check
      _
    $region7: #{tpu_custom_call.1} parent=1 // pred_check_branch
      %21 = sbr.rel (0) target = $region9
    $region8: #{tpu_custom_call.1} parent=1 // pred_region
      %s23 = ssub.s32 69632, 69632
      %24 = vsyncadd [#allocation6], %s23
      %s25 = sshll.u32 [#allocation5], 4
      %s26 = int_to_ptr.vmem [resolvable:$true] %s25
      %31 = dma.hbm_to_vmem [thread:$0]  %s1, 69632, %s26, [#allocation6], 2176, 2176, 136
    $region9: #{tpu_custom_call.1} parent=1 // pred_fallthru
      _
    // Predicated region
    $region10: #{tpu_custom_call.1} parent=1 // pred_check
      _
    $region11: #{tpu_custom_call.1} parent=1 // pred_check_branch
      %33 = sbr.rel (0) target = $region13
    $region12: #{tpu_custom_call.1} parent=1 // pred_region
      %34 = dma.done [#allocation3], 128
    $region13: #{tpu_custom_call.1} parent=1 // pred_fallthru
      _
    // Predicated region
    $region14: #{tpu_custom_call.1} parent=1 // pred_check
      _
    $region15: #{tpu_custom_call.1} parent=1 // pred_check_branch
      %36 = sbr.rel (0) target = $region17
    $region16: #{tpu_custom_call.1} parent=1 // pred_region
      %37 = dma.done [#allocation6], 69632
    $region17: #{tpu_custom_call.1} parent=1 // pred_fallthru
      _
    %v38 = vld [vmem:[#allocation2] sm:$0xff]
    %v39 = vld [vmem:[#allocation5] sm:$0xff]
    %v40 = vld [vmem:[#allocation5 + $0x8] sm:$0xff]
    %v41 = vld [vmem:[#allocation5 + $0x10] sm:$0xff]
    %v42 = vld [vmem:[#allocation5 + $0x88] sm:$0xff]
    %v43 = vld [vmem:[#allocation5 + $0x90] sm:$0xff]
    %v44 = vld [vmem:[#allocation5 + $0x98] sm:$0xff]
    %v45 = vld [vmem:[#allocation5 + $0x110] sm:$0xff]
    %v46 = vld [vmem:[#allocation5 + $0x118] sm:$0xff]
    %v47 = vld [vmem:[#allocation5 + $0x120] sm:$0xff]
    %v48 = vld [vmem:[#allocation5 + $0x198] sm:$0xff]
    %v49 = vld [vmem:[#allocation5 + $0x1a0] sm:$0xff]
    %v50 = vld [vmem:[#allocation5 + $0x1a8] sm:$0xff]
    %v51 = vld [vmem:[#allocation5 + $0x220] sm:$0xff]
    %v52 = vld [vmem:[#allocation5 + $0x228] sm:$0xff]
    %v53 = vld [vmem:[#allocation5 + $0x230] sm:$0xff]
    %v54 = vld [vmem:[#allocation5 + $0x2a8] sm:$0xff]
    %v55 = vld [vmem:[#allocation5 + $0x2b0] sm:$0xff]
    %v56 = vld [vmem:[#allocation5 + $0x2b8] sm:$0xff]
    %v57 = vld [vmem:[#allocation5 + $0x330] sm:$0xff]
    %v58 = vld [vmem:[#allocation5 + $0x338] sm:$0xff]
    %v59 = vld [vmem:[#allocation5 + $0x340] sm:$0xff]
    %v60 = vld [vmem:[#allocation5 + $0x3b8] sm:$0xff]
    %v61 = vld [vmem:[#allocation5 + $0x3c0] sm:$0xff]
    %v62 = vld [vmem:[#allocation5 + $0x3c8] sm:$0xff]
    %v63 = vld [vmem:[#allocation5 + $0x440] sm:$0xff]
    %v64 = vld [vmem:[#allocation5 + $0x448] sm:$0xff]
    %v65 = vld [vmem:[#allocation5 + $0x450] sm:$0xff]
    %v66 = vld [vmem:[#allocation5 + $0x4c8] sm:$0xff]
    %v67 = vld [vmem:[#allocation5 + $0x4d0] sm:$0xff]
    %v68 = vld [vmem:[#allocation5 + $0x4d8] sm:$0xff]
    %v69 = vld [vmem:[#allocation5 + $0x550] sm:$0xff]
    %v70 = vld [vmem:[#allocation5 + $0x558] sm:$0xff]
    %v71 = vld [vmem:[#allocation5 + $0x560] sm:$0xff]
    %v72 = vld [vmem:[#allocation5 + $0x5d8] sm:$0xff]
    %v73 = vld [vmem:[#allocation5 + $0x5e0] sm:$0xff]
    %v74 = vld [vmem:[#allocation5 + $0x5e8] sm:$0xff]
    %v75 = vld [vmem:[#allocation5 + $0x660] sm:$0xff]
    %v76 = vld [vmem:[#allocation5 + $0x668] sm:$0xff]
    %v77 = vld [vmem:[#allocation5 + $0x670] sm:$0xff]
    %v78 = vld [vmem:[#allocation5 + $0x6e8] sm:$0xff]
    %v79 = vld [vmem:[#allocation5 + $0x6f0] sm:$0xff]
    %v80 = vld [vmem:[#allocation5 + $0x6f8] sm:$0xff]
    %v81 = vld [vmem:[#allocation5 + $0x770] sm:$0xff]
    %v82 = vld [vmem:[#allocation5 + $0x778] sm:$0xff]
    %v83 = vld [vmem:[#allocation5 + $0x780] sm:$0xff]
    %v84 = vld [vmem:[#allocation5 + $0x7f8] sm:$0xff]
    %v85 = vld [vmem:[#allocation5 + $0x800] sm:$0xff]
    %v86 = vld [vmem:[#allocation5 + $0x808] sm:$0xff]
    %v87 = vld [vmem:[#allocation5 + $0x18] sm:$0xff]
    %v88 = vld [vmem:[#allocation5 + $0x20] sm:$0xff]
    %v89 = vld [vmem:[#allocation5 + $0x28] sm:$0xff]
    %v90 = vld [vmem:[#allocation5 + $0x30] sm:$0xff]
    %v91 = vld [vmem:[#allocation5 + $0xa0] sm:$0xff]
    %v92 = vld [vmem:[#allocation5 + $0xa8] sm:$0xff]
    %v93 = vld [vmem:[#allocation5 + $0xb0] sm:$0xff]
    %v94 = vld [vmem:[#allocation5 + $0xb8] sm:$0xff]
    %v95 = vld [vmem:[#allocation5 + $0x128] sm:$0xff]
    %v96 = vld [vmem:[#allocation5 + $0x130] sm:$0xff]
    %v97 = vld [vmem:[#allocation5 + $0x138] sm:$0xff]
    %v98 = vld [vmem:[#allocation5 + $0x140] sm:$0xff]
    %v99 = vld [vmem:[#allocation5 + $0x1b0] sm:$0xff]
    %v100 = vld [vmem:[#allocation5 + $0x1b8] sm:$0xff]
    %v101 = vld [vmem:[#allocation5 + $0x1c0] sm:$0xff]
    %v102 = vld [vmem:[#allocation5 + $0x1c8] sm:$0xff]
    %v103 = vld [vmem:[#allocation5 + $0x238] sm:$0xff]
    %v104 = vld [vmem:[#allocation5 + $0x240] sm:$0xff]
    %v105 = vld [vmem:[#allocation5 + $0x248] sm:$0xff]
    %v106 = vld [vmem:[#allocation5 + $0x250] sm:$0xff]
    %v107 = vld [vmem:[#allocation5 + $0x2c0] sm:$0xff]
    %v108 = vld [vmem:[#allocation5 + $0x2c8] sm:$0xff]
    %v109 = vld [vmem:[#allocation5 + $0x2d0] sm:$0xff]
    %v110 = vld [vmem:[#allocation5 + $0x2d8] sm:$0xff]
    %v111 = vld [vmem:[#allocation5 + $0x348] sm:$0xff]
    %v112 = vld [vmem:[#allocation5 + $0x350] sm:$0xff]
    %v113 = vld [vmem:[#allocation5 + $0x358] sm:$0xff]
    %v114 = vld [vmem:[#allocation5 + $0x360] sm:$0xff]
    %v115 = vld [vmem:[#allocation5 + $0x3d0] sm:$0xff]
    %v116 = vld [vmem:[#allocation5 + $0x3d8] sm:$0xff]
    %v117 = vld [vmem:[#allocation5 + $0x3e0] sm:$0xff]
    %v118 = vld [vmem:[#allocation5 + $0x3e8] sm:$0xff]
    %v119 = vld [vmem:[#allocation5 + $0x458] sm:$0xff]
    %v120 = vld [vmem:[#allocation5 + $0x460] sm:$0xff]
    %v121 = vld [vmem:[#allocation5 + $0x468] sm:$0xff]
    %v122 = vld [vmem:[#allocation5 + $0x470] sm:$0xff]
    %v123 = vld [vmem:[#allocation5 + $0x4e0] sm:$0xff]
    %v124 = vld [vmem:[#allocation5 + $0x4e8] sm:$0xff]
    %v125 = vld [vmem:[#allocation5 + $0x4f0] sm:$0xff]
    %v126 = vld [vmem:[#allocation5 + $0x4f8] sm:$0xff]
    %v127 = vld [vmem:[#allocation5 + $0x568] sm:$0xff]
    %v128 = vld [vmem:[#allocation5 + $0x570] sm:$0xff]
    %v129 = vld [vmem:[#allocation5 + $0x578] sm:$0xff]
    %v130 = vld [vmem:[#allocation5 + $0x580] sm:$0xff]
    %v131 = vld [vmem:[#allocation5 + $0x5f0] sm:$0xff]
    %v132 = vld [vmem:[#allocation5 + $0x5f8] sm:$0xff]
    %v133 = vld [vmem:[#allocation5 + $0x600] sm:$0xff]
    %v134 = vld [vmem:[#allocation5 + $0x608] sm:$0xff]
    %v135 = vld [vmem:[#allocation5 + $0x678] sm:$0xff]
    %v136 = vld [vmem:[#allocation5 + $0x680] sm:$0xff]
    %v137 = vld [vmem:[#allocation5 + $0x688] sm:$0xff]
    %v138 = vld [vmem:[#allocation5 + $0x690] sm:$0xff]
    %v139 = vld [vmem:[#allocation5 + $0x700] sm:$0xff]
    %v140 = vld [vmem:[#allocation5 + $0x708] sm:$0xff]
    %v141 = vld [vmem:[#allocation5 + $0x710] sm:$0xff]
    %v142 = vld [vmem:[#allocation5 + $0x718] sm:$0xff]
    %v143 = vld [vmem:[#allocation5 + $0x788] sm:$0xff]
    %v144 = vld [vmem:[#allocation5 + $0x790] sm:$0xff]
    %v145 = vld [vmem:[#allocation5 + $0x798] sm:$0xff]
    %v146 = vld [vmem:[#allocation5 + $0x7a0] sm:$0xff]
    %v147 = vld [vmem:[#allocation5 + $0x810] sm:$0xff]
    %v148 = vld [vmem:[#allocation5 + $0x818] sm:$0xff]
    %v149 = vld [vmem:[#allocation5 + $0x820] sm:$0xff]
    %v150 = vld [vmem:[#allocation5 + $0x828] sm:$0xff]
    %v151 = vld [vmem:[#allocation5 + $0x898] sm:$0xff]
    %v152 = vld [vmem:[#allocation5 + $0x8a0] sm:$0xff]
    %v153 = vld [vmem:[#allocation5 + $0x8a8] sm:$0xff]
    %v154 = vld [vmem:[#allocation5 + $0x8b0] sm:$0xff]
    %v155 = vld [vmem:[#allocation5 + $0x920] sm:$0xff]
    %v156 = vld [vmem:[#allocation5 + $0x928] sm:$0xff]
    %v157 = vld [vmem:[#allocation5 + $0x930] sm:$0xff]
    %v158 = vld [vmem:[#allocation5 + $0x938] sm:$0xff]
    %v159 = vld [vmem:[#allocation5 + $0x9a8] sm:$0xff]
    %v160 = vld [vmem:[#allocation5 + $0x9b0] sm:$0xff]
    %v161 = vld [vmem:[#allocation5 + $0x9b8] sm:$0xff]
    %v162 = vld [vmem:[#allocation5 + $0x9c0] sm:$0xff]
    %v163 = vld [vmem:[#allocation5 + $0xa30] sm:$0xff]
    %v164 = vld [vmem:[#allocation5 + $0xa38] sm:$0xff]
    %v165 = vld [vmem:[#allocation5 + $0xa40] sm:$0xff]
    %v166 = vld [vmem:[#allocation5 + $0xa48] sm:$0xff]
    %v167 = vld [vmem:[#allocation5 + $0xab8] sm:$0xff]
    %v168 = vld [vmem:[#allocation5 + $0xac0] sm:$0xff]
    %v169 = vld [vmem:[#allocation5 + $0xac8] sm:$0xff]
    %v170 = vld [vmem:[#allocation5 + $0xad0] sm:$0xff]
    %v171 = vld [vmem:[#allocation5 + $0xb40] sm:$0xff]
    %v172 = vld [vmem:[#allocation5 + $0xb48] sm:$0xff]
    %v173 = vld [vmem:[#allocation5 + $0xb50] sm:$0xff]
    %v174 = vld [vmem:[#allocation5 + $0xb58] sm:$0xff]
    %v175 = vld [vmem:[#allocation5 + $0xbc8] sm:$0xff]
    %v176 = vld [vmem:[#allocation5 + $0xbd0] sm:$0xff]
    %v177 = vld [vmem:[#allocation5 + $0xbd8] sm:$0xff]
    %v178 = vld [vmem:[#allocation5 + $0xbe0] sm:$0xff]
    %v179 = vld [vmem:[#allocation5 + $0xc50] sm:$0xff]
    %v180 = vld [vmem:[#allocation5 + $0xc58] sm:$0xff]
    %v181 = vld [vmem:[#allocation5 + $0xc60] sm:$0xff]
    %v182 = vld [vmem:[#allocation5 + $0xc68] sm:$0xff]
    %v183 = vld [vmem:[#allocation5 + $0xcd8] sm:$0xff]
    %v184 = vld [vmem:[#allocation5 + $0xce0] sm:$0xff]
    %v185 = vld [vmem:[#allocation5 + $0xce8] sm:$0xff]
    %v186 = vld [vmem:[#allocation5 + $0xcf0] sm:$0xff]
    %v187 = vld [vmem:[#allocation5 + $0xd60] sm:$0xff]
    %v188 = vld [vmem:[#allocation5 + $0xd68] sm:$0xff]
    %v189 = vld [vmem:[#allocation5 + $0xd70] sm:$0xff]
    %v190 = vld [vmem:[#allocation5 + $0xd78] sm:$0xff]
    %v191 = vld [vmem:[#allocation5 + $0xde8] sm:$0xff]
    %v192 = vld [vmem:[#allocation5 + $0xdf0] sm:$0xff]
    %v193 = vld [vmem:[#allocation5 + $0xdf8] sm:$0xff]
    %v194 = vld [vmem:[#allocation5 + $0xe00] sm:$0xff]
    %v195 = vld [vmem:[#allocation5 + $0xe70] sm:$0xff]
    %v196 = vld [vmem:[#allocation5 + $0xe78] sm:$0xff]
    %v197 = vld [vmem:[#allocation5 + $0xe80] sm:$0xff]
    %v198 = vld [vmem:[#allocation5 + $0xe88] sm:$0xff]
    %v199 = vld [vmem:[#allocation5 + $0xef8] sm:$0xff]
    %v200 = vld [vmem:[#allocation5 + $0xf00] sm:$0xff]
    %v201 = vld [vmem:[#allocation5 + $0xf08] sm:$0xff]
    %v202 = vld [vmem:[#allocation5 + $0xf10] sm:$0xff]
    %v203 = vld [vmem:[#allocation5 + $0xf80] sm:$0xff]
    %v204 = vld [vmem:[#allocation5 + $0xf88] sm:$0xff]
    %v205 = vld [vmem:[#allocation5 + $0xf90] sm:$0xff]
    %v206 = vld [vmem:[#allocation5 + $0xf98] sm:$0xff]
    %v207 = vld [vmem:[#allocation5 + $0x1008] sm:$0xff]
    %v208 = vld [vmem:[#allocation5 + $0x1010] sm:$0xff]
    %v209 = vld [vmem:[#allocation5 + $0x1018] sm:$0xff]
    %v210 = vld [vmem:[#allocation5 + $0x1020] sm:$0xff]
    %v211 = vld [vmem:[#allocation5 + $0x1090] sm:$0xff]
    %v212 = vld [vmem:[#allocation5 + $0x1098] sm:$0xff]
    %v213 = vld [vmem:[#allocation5 + $0x10a0] sm:$0xff]
    %v214 = vld [vmem:[#allocation5 + $0x10a8] sm:$0xff]
    %v215 = vld [vmem:[#allocation5 + $0x38] sm:$0xff]
    %v216 = vld [vmem:[#allocation5 + $0xc0] sm:$0xff]
    %v217 = vld [vmem:[#allocation5 + $0x148] sm:$0xff]
    %v218 = vld [vmem:[#allocation5 + $0x1d0] sm:$0xff]
    %v219 = vld [vmem:[#allocation5 + $0x258] sm:$0xff]
    %v220 = vld [vmem:[#allocation5 + $0x2e0] sm:$0xff]
    %v221 = vld [vmem:[#allocation5 + $0x368] sm:$0xff]
    %v222 = vld [vmem:[#allocation5 + $0x3f0] sm:$0xff]
    %v223 = vld [vmem:[#allocation5 + $0x478] sm:$0xff]
    %v224 = vld [vmem:[#allocation5 + $0x500] sm:$0xff]
    %v225 = vld [vmem:[#allocation5 + $0x588] sm:$0xff]
    %v226 = vld [vmem:[#allocation5 + $0x610] sm:$0xff]
    %v227 = vld [vmem:[#allocation5 + $0x698] sm:$0xff]
    %v228 = vld [vmem:[#allocation5 + $0x720] sm:$0xff]
    %v229 = vld [vmem:[#allocation5 + $0x7a8] sm:$0xff]
    %v230 = vld [vmem:[#allocation5 + $0x830] sm:$0xff]
    %v231 = vld [vmem:[#allocation5 + $0x40] sm:$0xff]
    %v232 = vld [vmem:[#allocation5 + $0xc8] sm:$0xff]
    %v233 = vld [vmem:[#allocation5 + $0x150] sm:$0xff]
    %v234 = vld [vmem:[#allocation5 + $0x1d8] sm:$0xff]
    %v235 = vld [vmem:[#allocation5 + $0x260] sm:$0xff]
    %v236 = vld [vmem:[#allocation5 + $0x2e8] sm:$0xff]
    %v237 = vld [vmem:[#allocation5 + $0x370] sm:$0xff]
    %v238 = vld [vmem:[#allocation5 + $0x3f8] sm:$0xff]
    %v239 = vld [vmem:[#allocation5 + $0x480] sm:$0xff]
    %v240 = vld [vmem:[#allocation5 + $0x508] sm:$0xff]
    %v241 = vld [vmem:[#allocation5 + $0x590] sm:$0xff]
    %v242 = vld [vmem:[#allocation5 + $0x618] sm:$0xff]
    %v243 = vld [vmem:[#allocation5 + $0x6a0] sm:$0xff]
    %v244 = vld [vmem:[#allocation5 + $0x728] sm:$0xff]
    %v245 = vld [vmem:[#allocation5 + $0x7b0] sm:$0xff]
    %v246 = vld [vmem:[#allocation5 + $0x838] sm:$0xff]
    %s247 = scalar_lea.vmem [#allocation5], 72
    %v248 = vld [vmem:[%s247] ss:$8 sm:$0x7]
    %s249 = scalar_lea.vmem [#allocation5], 96
    %v250 = vld [vmem:[%s249] ss:$8 sm:$0xf]
    %v251 = vld [vmem:[#allocation5 + $0x80] ss:$0 sm:$0xff]
    %v253 = vlaneseq
    %v254 = vshrl.u32 %v253, 7
    %v255 = vsub.s32 0, %v254
    %v256 = vrot.slane %v248, %v255
    %v257 = vlaneseq
    %v258 = vshrl.u32 %v257, 7
    %v259 = vsub.s32 1, %v258
    %v260 = vrot.slane %v248, %v259
    %v261 = vlaneseq
    %v262 = vshrl.u32 %v261, 7
    %v263 = vsub.s32 2, %v262
    %v264 = vrot.slane %v248, %v263
    %268 = vmatprep.subr.mxu0 %v40
    %269 = vmatpush1.msra.mxu0 %v39
    %270 = vmatprep.subr.mxu0 %v43
    %271 = vmatpush1.msra.mxu0 %v42
    %272 = vmatprep.subr.mxu0 %v46
    %273 = vmatpush1.msra.mxu0 %v45
    %274 = vmatprep.subr.mxu0 %v49
    %275 = vmatpush1.msra.mxu0 %v48
    %276 = vmatprep.subr.mxu0 %v52
    %277 = vmatpush1.msra.mxu0 %v51
    %278 = vmatprep.subr.mxu0 %v55
    %279 = vmatpush1.msra.mxu0 %v54
    %280 = vmatprep.subr.mxu0 %v58
    %281 = vmatpush1.msra.mxu0 %v57
    %282 = vmatprep.subr.mxu0 %v61
    %283 = vmatpush1.msra.mxu0 %v60
    %284 = vmatprep.subr.mxu0 %v64
    %285 = vmatpush1.msra.mxu0 %v63
    %286 = vmatprep.subr.mxu0 %v67
    %287 = vmatpush1.msra.mxu0 %v66
    %288 = vmatprep.subr.mxu0 %v70
    %289 = vmatpush1.msra.mxu0 %v69
    %290 = vmatprep.subr.mxu0 %v73
    %291 = vmatpush1.msra.mxu0 %v72
    %292 = vmatprep.subr.mxu0 %v76
    %293 = vmatpush1.msra.mxu0 %v75
    %294 = vmatprep.subr.mxu0 %v79
    %295 = vmatpush1.msra.mxu0 %v78
    %296 = vmatprep.subr.mxu0 %v82
    %297 = vmatpush1.msra.mxu0 %v81
    %298 = vmatprep.subr.mxu0 %v85
    %299 = vmatpush1.msra.mxu0 %v84
    %300 = vmatprep.subr.mxu0 0.0
    %301 = vmatpush1.msra.mxu0 0.0
    %302 = vmatprep.subr.mxu0 0.0
    %303 = vmatpush1.msra.mxu0 0.0
    %304 = vmatprep.subr.mxu0 0.0
    %305 = vmatpush1.msra.mxu0 0.0
    %306 = vmatprep.subr.mxu0 0.0
    %307 = vmatpush1.msra.mxu0 0.0
    %308 = vmatprep.subr.mxu0 0.0
    %309 = vmatpush1.msra.mxu0 0.0
    %310 = vmatprep.subr.mxu0 0.0
    %311 = vmatpush1.msra.mxu0 0.0
    %312 = vmatprep.subr.mxu0 0.0
    %313 = vmatpush1.msra.mxu0 0.0
    %314 = vmatprep.subr.mxu0 0.0
    %315 = vmatpush1.msra.mxu0 0.0
    %316 = vmatprep.subr.mxu0 0.0
    %317 = vmatpush1.msra.mxu0 0.0
    %318 = vmatprep.subr.mxu0 0.0
    %319 = vmatpush1.msra.mxu0 0.0
    %320 = vmatprep.subr.mxu0 0.0
    %321 = vmatpush1.msra.mxu0 0.0
    %322 = vmatprep.subr.mxu0 0.0
    %323 = vmatpush1.msra.mxu0 0.0
    %324 = vmatprep.subr.mxu0 0.0
    %325 = vmatpush1.msra.mxu0 0.0
    %326 = vmatprep.subr.mxu0 0.0
    %327 = vmatpush1.msra.mxu0 0.0
    %328 = vmatprep.subr.mxu0 0.0
    %329 = vmatpush1.msra.mxu0 0.0
    %330 = vmatprep.subr.mxu0 0.0
    %331 = vmatpush1.msra.mxu0 0.0
    %332 = vmatprep.mubr.f32.mxu0 0.0
    %333 = vmatmul.mubr.f32.gmra.mrb[0].mxu0 %v38
    %v334 = vpop.f32.mrb[0].mxu0
    %v335 = vadd.f32 %v256, %v334
    %v336 = vpop.f32.mrb[0].mxu0
    %v337 = vadd.f32 %v260, %v336
    %338 = vdwg.mxu0
    %339 = vmatprep.subr.mxu0 0.0
    %340 = vmatpush1.msra.mxu0 %v41
    %341 = vmatprep.subr.mxu0 0.0
    %342 = vmatpush1.msra.mxu0 %v44
    %343 = vmatprep.subr.mxu0 0.0
    %344 = vmatpush1.msra.mxu0 %v47
    %345 = vmatprep.subr.mxu0 0.0
    %346 = vmatpush1.msra.mxu0 %v50
    %347 = vmatprep.subr.mxu0 0.0
    %348 = vmatpush1.msra.mxu0 %v53
    %349 = vmatprep.subr.mxu0 0.0
    %350 = vmatpush1.msra.mxu0 %v56
    %351 = vmatprep.subr.mxu0 0.0
    %352 = vmatpush1.msra.mxu0 %v59
    %353 = vmatprep.subr.mxu0 0.0
    %354 = vmatpush1.msra.mxu0 %v62
    %355 = vmatprep.subr.mxu0 0.0
    %356 = vmatpush1.msra.mxu0 %v65
    %357 = vmatprep.subr.mxu0 0.0
    %358 = vmatpush1.msra.mxu0 %v68
    %359 = vmatprep.subr.mxu0 0.0
    %360 = vmatpush1.msra.mxu0 %v71
    %361 = vmatprep.subr.mxu0 0.0
    %362 = vmatpush1.msra.mxu0 %v74
    %363 = vmatprep.subr.mxu0 0.0
    %364 = vmatpush1.msra.mxu0 %v77
    %365 = vmatprep.subr.mxu0 0.0
    %366 = vmatpush1.msra.mxu0 %v80
    %367 = vmatprep.subr.mxu0 0.0
    %368 = vmatpush1.msra.mxu0 %v83
    %369 = vmatprep.subr.mxu0 0.0
    %370 = vmatpush1.msra.mxu0 %v86
    %371 = vmatprep.subr.mxu0 0.0
    %372 = vmatpush1.msra.mxu0 0.0
    %373 = vmatprep.subr.mxu0 0.0
    %374 = vmatpush1.msra.mxu0 0.0
    %375 = vmatprep.subr.mxu0 0.0
    %376 = vmatpush1.msra.mxu0 0.0
    %377 = vmatprep.subr.mxu0 0.0
    %378 = vmatpush1.msra.mxu0 0.0
    %379 = vmatprep.subr.mxu0 0.0
    %380 = vmatpush1.msra.mxu0 0.0
    %381 = vmatprep.subr.mxu0 0.0
    %382 = vmatpush1.msra.mxu0 0.0
    %383 = vmatprep.subr.mxu0 0.0
    %384 = vmatpush1.msra.mxu0 0.0
    %385 = vmatprep.subr.mxu0 0.0
    %386 = vmatpush1.msra.mxu0 0.0
    %387 = vmatprep.subr.mxu0 0.0
    %388 = vmatpush1.msra.mxu0 0.0
    %389 = vmatprep.subr.mxu0 0.0
    %390 = vmatpush1.msra.mxu0 0.0
    %391 = vmatprep.subr.mxu0 0.0
    %392 = vmatpush1.msra.mxu0 0.0
    %393 = vmatprep.subr.mxu0 0.0
    %394 = vmatpush1.msra.mxu0 0.0
    %395 = vmatprep.subr.mxu0 0.0
    %396 = vmatpush1.msra.mxu0 0.0
    %397 = vmatprep.subr.mxu0 0.0
    %398 = vmatpush1.msra.mxu0 0.0
    %399 = vmatprep.subr.mxu0 0.0
    %400 = vmatpush1.msra.mxu0 0.0
    %401 = vmatprep.subr.mxu0 0.0
    %402 = vmatpush1.msra.mxu0 0.0
    %403 = vmatprep.mubr.f32.mxu0 0.0
    %404 = vmatmul.mubr.f32.gmra.mrb[0].mxu0 %v38
    %v405 = vpop.f32.mrb[0].mxu0
    %v406 = vadd.f32 %v264, %v405
    %v407 = vpop.f32.mrb[0].mxu0
    %408 = vdwg.mxu0
    %v409 = vmax.f32 %v335, 0.0
    %v410 = vmax.f32 %v337, 0.0
    %v412 = vlaneseq
    %v413 = vshrl.u32 %v412, 7
    %v414 = vsub.s32 0, %v413
    %v415 = vrot.slane %v250, %v414
    %v416 = vlaneseq
    %v417 = vshrl.u32 %v416, 7
    %v418 = vsub.s32 1, %v417
    %v419 = vrot.slane %v250, %v418
    %v420 = vlaneseq
    %v421 = vshrl.u32 %v420, 7
    %v422 = vsub.s32 2, %v421
    %v423 = vrot.slane %v250, %v422
    %v424 = vlaneseq
    %v425 = vshrl.u32 %v424, 7
    %v426 = vsub.s32 3, %v425
    %v427 = vrot.slane %v250, %v426
    %432 = vmatprep.subr.mxu0 %v88
    %433 = vmatpush1.msra.mxu0 %v87
    %434 = vmatprep.subr.mxu0 %v92
    %435 = vmatpush1.msra.mxu0 %v91
    %436 = vmatprep.subr.mxu0 %v96
    %437 = vmatpush1.msra.mxu0 %v95
    %438 = vmatprep.subr.mxu0 %v100
    %439 = vmatpush1.msra.mxu0 %v99
    %440 = vmatprep.subr.mxu0 %v104
    %441 = vmatpush1.msra.mxu0 %v103
    %442 = vmatprep.subr.mxu0 %v108
    %443 = vmatpush1.msra.mxu0 %v107
    %444 = vmatprep.subr.mxu0 %v112
    %445 = vmatpush1.msra.mxu0 %v111
    %446 = vmatprep.subr.mxu0 %v116
    %447 = vmatpush1.msra.mxu0 %v115
    %448 = vmatprep.subr.mxu0 %v120
    %449 = vmatpush1.msra.mxu0 %v119
    %450 = vmatprep.subr.mxu0 %v124
    %451 = vmatpush1.msra.mxu0 %v123
    %452 = vmatprep.subr.mxu0 %v128
    %453 = vmatpush1.msra.mxu0 %v127
    %454 = vmatprep.subr.mxu0 %v132
    %455 = vmatpush1.msra.mxu0 %v131
    %456 = vmatprep.subr.mxu0 %v136
    %457 = vmatpush1.msra.mxu0 %v135
    %458 = vmatprep.subr.mxu0 %v140
    %459 = vmatpush1.msra.mxu0 %v139
    %460 = vmatprep.subr.mxu0 %v144
    %461 = vmatpush1.msra.mxu0 %v143
    %462 = vmatprep.subr.mxu0 %v148
    %463 = vmatpush1.msra.mxu0 %v147
    %464 = vmatprep.subr.mxu0 %v152
    %465 = vmatpush1.msra.mxu0 %v151
    %466 = vmatprep.subr.mxu0 %v156
    %467 = vmatpush1.msra.mxu0 %v155
    %468 = vmatprep.subr.mxu0 %v160
    %469 = vmatpush1.msra.mxu0 %v159
    %470 = vmatprep.subr.mxu0 %v164
    %471 = vmatpush1.msra.mxu0 %v163
    %472 = vmatprep.subr.mxu0 %v168
    %473 = vmatpush1.msra.mxu0 %v167
    %474 = vmatprep.subr.mxu0 %v172
    %475 = vmatpush1.msra.mxu0 %v171
    %476 = vmatprep.subr.mxu0 %v176
    %477 = vmatpush1.msra.mxu0 %v175
    %478 = vmatprep.subr.mxu0 %v180
    %479 = vmatpush1.msra.mxu0 %v179
    %480 = vmatprep.subr.mxu0 %v184
    %481 = vmatpush1.msra.mxu0 %v183
    %482 = vmatprep.subr.mxu0 %v188
    %483 = vmatpush1.msra.mxu0 %v187
    %484 = vmatprep.subr.mxu0 %v192
    %485 = vmatpush1.msra.mxu0 %v191
    %486 = vmatprep.subr.mxu0 %v196
    %487 = vmatpush1.msra.mxu0 %v195
    %488 = vmatprep.subr.mxu0 %v200
    %489 = vmatpush1.msra.mxu0 %v199
    %490 = vmatprep.subr.mxu0 %v204
    %491 = vmatpush1.msra.mxu0 %v203
    %492 = vmatprep.subr.mxu0 %v208
    %493 = vmatpush1.msra.mxu0 %v207
    %494 = vmatprep.subr.mxu0 %v212
    %495 = vmatpush1.msra.mxu0 %v211
    %496 = vmatprep.mubr.f32.mxu0 %v410
    %497 = vmatmul.mubr.f32.gmra.mrb[0].mxu0 %v409
    %v498 = vpop.f32.mrb[0].mxu0
    %v499 = vadd.f32 %v415, %v498
    %v500 = vpop.f32.mrb[0].mxu0
    %v501 = vadd.f32 %v419, %v500
    %502 = vdwg.mxu0
    %503 = vmatprep.subr.mxu0 %v90
    %504 = vmatpush1.msra.mxu0 %v89
    %505 = vmatprep.subr.mxu0 %v94
    %506 = vmatpush1.msra.mxu0 %v93
    %507 = vmatprep.subr.mxu0 %v98
    %508 = vmatpush1.msra.mxu0 %v97
    %509 = vmatprep.subr.mxu0 %v102
    %510 = vmatpush1.msra.mxu0 %v101
    %511 = vmatprep.subr.mxu0 %v106
    %512 = vmatpush1.msra.mxu0 %v105
    %513 = vmatprep.subr.mxu0 %v110
    %514 = vmatpush1.msra.mxu0 %v109
    %515 = vmatprep.subr.mxu0 %v114
    %516 = vmatpush1.msra.mxu0 %v113
    %517 = vmatprep.subr.mxu0 %v118
    %518 = vmatpush1.msra.mxu0 %v117
    %519 = vmatprep.subr.mxu0 %v122
    %520 = vmatpush1.msra.mxu0 %v121
    %521 = vmatprep.subr.mxu0 %v126
    %522 = vmatpush1.msra.mxu0 %v125
    %523 = vmatprep.subr.mxu0 %v130
    %524 = vmatpush1.msra.mxu0 %v129
    %525 = vmatprep.subr.mxu0 %v134
    %526 = vmatpush1.msra.mxu0 %v133
    %527 = vmatprep.subr.mxu0 %v138
    %528 = vmatpush1.msra.mxu0 %v137
    %529 = vmatprep.subr.mxu0 %v142
    %530 = vmatpush1.msra.mxu0 %v141
    %531 = vmatprep.subr.mxu0 %v146
    %532 = vmatpush1.msra.mxu0 %v145
    %533 = vmatprep.subr.mxu0 %v150
    %534 = vmatpush1.msra.mxu0 %v149
    %535 = vmatprep.subr.mxu0 %v154
    %536 = vmatpush1.msra.mxu0 %v153
    %537 = vmatprep.subr.mxu0 %v158
    %538 = vmatpush1.msra.mxu0 %v157
    %539 = vmatprep.subr.mxu0 %v162
    %540 = vmatpush1.msra.mxu0 %v161
    %541 = vmatprep.subr.mxu0 %v166
    %542 = vmatpush1.msra.mxu0 %v165
    %543 = vmatprep.subr.mxu0 %v170
    %544 = vmatpush1.msra.mxu0 %v169
    %545 = vmatprep.subr.mxu0 %v174
    %546 = vmatpush1.msra.mxu0 %v173
    %547 = vmatprep.subr.mxu0 %v178
    %548 = vmatpush1.msra.mxu0 %v177
    %549 = vmatprep.subr.mxu0 %v182
    %550 = vmatpush1.msra.mxu0 %v181
    %551 = vmatprep.subr.mxu0 %v186
    %552 = vmatpush1.msra.mxu0 %v185
    %553 = vmatprep.subr.mxu0 %v190
    %554 = vmatpush1.msra.mxu0 %v189
    %555 = vmatprep.subr.mxu0 %v194
    %556 = vmatpush1.msra.mxu0 %v193
    %557 = vmatprep.subr.mxu0 %v198
    %558 = vmatpush1.msra.mxu0 %v197
    %559 = vmatprep.subr.mxu0 %v202
    %560 = vmatpush1.msra.mxu0 %v201
    %561 = vmatprep.subr.mxu0 %v206
    %562 = vmatpush1.msra.mxu0 %v205
    %563 = vmatprep.subr.mxu0 %v210
    %564 = vmatpush1.msra.mxu0 %v209
    %565 = vmatprep.subr.mxu0 %v214
    %566 = vmatpush1.msra.mxu0 %v213
    %567 = vmatprep.mubr.f32.mxu0 %v410
    %568 = vmatmul.mubr.f32.gmra.mrb[0].mxu0 %v409
    %v569 = vpop.f32.mrb[0].mxu0
    %v570 = vadd.f32 %v423, %v569
    %v571 = vpop.f32.mrb[0].mxu0
    %v572 = vadd.f32 %v427, %v571
    %573 = vdwg.mxu0
    %v574 = vmul.f32 %v501, 0.5
    %v575 = vmul.f32 %v574, 1.442695
    %v576 = vpow.pop %v575
    %v577 = vmul.f32 %v38, %v576
    %v578 = vadd.f32 %v577, %v499
    %579 = vmatprep.subr.mxu0 0.0
    %580 = vmatpush1.msra.mxu0 %v215
    %581 = vmatprep.subr.mxu0 0.0
    %582 = vmatpush1.msra.mxu0 %v216
    %583 = vmatprep.subr.mxu0 0.0
    %584 = vmatpush1.msra.mxu0 %v217
    %585 = vmatprep.subr.mxu0 0.0
    %586 = vmatpush1.msra.mxu0 %v218
    %587 = vmatprep.subr.mxu0 0.0
    %588 = vmatpush1.msra.mxu0 %v219
    %589 = vmatprep.subr.mxu0 0.0
    %590 = vmatpush1.msra.mxu0 %v220
    %591 = vmatprep.subr.mxu0 0.0
    %592 = vmatpush1.msra.mxu0 %v221
    %593 = vmatprep.subr.mxu0 0.0
    %594 = vmatpush1.msra.mxu0 %v222
    %595 = vmatprep.subr.mxu0 0.0
    %596 = vmatpush1.msra.mxu0 %v223
    %597 = vmatprep.subr.mxu0 0.0
    %598 = vmatpush1.msra.mxu0 %v224
    %599 = vmatprep.subr.mxu0 0.0
    %600 = vmatpush1.msra.mxu0 %v225
    %601 = vmatprep.subr.mxu0 0.0
    %602 = vmatpush1.msra.mxu0 %v226
    %603 = vmatprep.subr.mxu0 0.0
    %604 = vmatpush1.msra.mxu0 %v227
    %605 = vmatprep.subr.mxu0 0.0
    %606 = vmatpush1.msra.mxu0 %v228
    %607 = vmatprep.subr.mxu0 0.0
    %608 = vmatpush1.msra.mxu0 %v229
    %609 = vmatprep.subr.mxu0 0.0
    %610 = vmatpush1.msra.mxu0 %v230
    %611 = vmatprep.subr.mxu0 0.0
    %612 = vmatpush1.msra.mxu0 0.0
    %613 = vmatprep.subr.mxu0 0.0
    %614 = vmatpush1.msra.mxu0 0.0
    %615 = vmatprep.subr.mxu0 0.0
    %616 = vmatpush1.msra.mxu0 0.0
    %617 = vmatprep.subr.mxu0 0.0
    %618 = vmatpush1.msra.mxu0 0.0
    %619 = vmatprep.subr.mxu0 0.0
    %620 = vmatpush1.msra.mxu0 0.0
    %621 = vmatprep.subr.mxu0 0.0
    %622 = vmatpush1.msra.mxu0 0.0
    %623 = vmatprep.subr.mxu0 0.0
    %624 = vmatpush1.msra.mxu0 0.0
    %625 = vmatprep.subr.mxu0 0.0
    %626 = vmatpush1.msra.mxu0 0.0
    %627 = vmatprep.subr.mxu0 0.0
    %628 = vmatpush1.msra.mxu0 0.0
    %629 = vmatprep.subr.mxu0 0.0
    %630 = vmatpush1.msra.mxu0 0.0
    %631 = vmatprep.subr.mxu0 0.0
    %632 = vmatpush1.msra.mxu0 0.0
    %633 = vmatprep.subr.mxu0 0.0
    %634 = vmatpush1.msra.mxu0 0.0
    %635 = vmatprep.subr.mxu0 0.0
    %636 = vmatpush1.msra.mxu0 0.0
    %637 = vmatprep.subr.mxu0 0.0
    %638 = vmatpush1.msra.mxu0 0.0
    %639 = vmatprep.subr.mxu0 0.0
    %640 = vmatpush1.msra.mxu0 0.0
    %641 = vmatprep.subr.mxu0 0.0
    %642 = vmatpush1.msra.mxu0 0.0
    %643 = vmatprep.mubr.f32.mxu0 0.0
    %644 = vmatmul.mubr.f32.gmra.mrb[0].mxu0 %v578
    %v645 = vpop.f32.mrb[0].mxu0
    %v646 = vadd.f32 0.0, %v645
    %v647 = vpop.f32.mrb[0].mxu0
    %648 = vdwg.mxu0
    %v649 = vadd.f32 %v406, %v646
    %v650 = vmax.f32 %v649, 0.0
    %651 = vmatprep.subr.mxu0 0.0
    %652 = vmatpush1.msra.mxu0 %v231
    %653 = vmatprep.subr.mxu0 0.0
    %654 = vmatpush1.msra.mxu0 %v232
    %655 = vmatprep.subr.mxu0 0.0
    %656 = vmatpush1.msra.mxu0 %v233
    %657 = vmatprep.subr.mxu0 0.0
    %658 = vmatpush1.msra.mxu0 %v234
    %659 = vmatprep.subr.mxu0 0.0
    %660 = vmatpush1.msra.mxu0 %v235
    %661 = vmatprep.subr.mxu0 0.0
    %662 = vmatpush1.msra.mxu0 %v236
    %663 = vmatprep.subr.mxu0 0.0
    %664 = vmatpush1.msra.mxu0 %v237
    %665 = vmatprep.subr.mxu0 0.0
    %666 = vmatpush1.msra.mxu0 %v238
    %667 = vmatprep.subr.mxu0 0.0
    %668 = vmatpush1.msra.mxu0 %v239
    %669 = vmatprep.subr.mxu0 0.0
    %670 = vmatpush1.msra.mxu0 %v240
    %671 = vmatprep.subr.mxu0 0.0
    %672 = vmatpush1.msra.mxu0 %v241
    %673 = vmatprep.subr.mxu0 0.0
    %674 = vmatpush1.msra.mxu0 %v242
    %675 = vmatprep.subr.mxu0 0.0
    %676 = vmatpush1.msra.mxu0 %v243
    %677 = vmatprep.subr.mxu0 0.0
    %678 = vmatpush1.msra.mxu0 %v244
    %679 = vmatprep.subr.mxu0 0.0
    %680 = vmatpush1.msra.mxu0 %v245
    %681 = vmatprep.subr.mxu0 0.0
    %682 = vmatpush1.msra.mxu0 %v246
    %683 = vmatprep.subr.mxu0 0.0
    %684 = vmatpush1.msra.mxu0 0.0
    %685 = vmatprep.subr.mxu0 0.0
    %686 = vmatpush1.msra.mxu0 0.0
    %687 = vmatprep.subr.mxu0 0.0
    %688 = vmatpush1.msra.mxu0 0.0
    %689 = vmatprep.subr.mxu0 0.0
    %690 = vmatpush1.msra.mxu0 0.0
    %691 = vmatprep.subr.mxu0 0.0
    %692 = vmatpush1.msra.mxu0 0.0
    %693 = vmatprep.subr.mxu0 0.0
    %694 = vmatpush1.msra.mxu0 0.0
    %695 = vmatprep.subr.mxu0 0.0
    %696 = vmatpush1.msra.mxu0 0.0
    %697 = vmatprep.subr.mxu0 0.0
    %698 = vmatpush1.msra.mxu0 0.0
    %699 = vmatprep.subr.mxu0 0.0
    %700 = vmatpush1.msra.mxu0 0.0
    %701 = vmatprep.subr.mxu0 0.0
    %702 = vmatpush1.msra.mxu0 0.0
    %703 = vmatprep.subr.mxu0 0.0
    %704 = vmatpush1.msra.mxu0 0.0
    %705 = vmatprep.subr.mxu0 0.0
    %706 = vmatpush1.msra.mxu0 0.0
    %707 = vmatprep.subr.mxu0 0.0
    %708 = vmatpush1.msra.mxu0 0.0
    %709 = vmatprep.subr.mxu0 0.0
    %710 = vmatpush1.msra.mxu0 0.0
    %711 = vmatprep.subr.mxu0 0.0
    %712 = vmatpush1.msra.mxu0 0.0
    %713 = vmatprep.subr.mxu0 0.0
    %714 = vmatpush1.msra.mxu0 0.0
    %715 = vmatprep.mubr.f32.mxu0 0.0
    %716 = vmatmul.mubr.f32.gmra.mrb[0].mxu0 %v650
    %v717 = vpop.f32.mrb[0].mxu0
    %v718 = vadd.f32 %v251, %v717
    %v719 = vpop.f32.mrb[0].mxu0
    %720 = vdwg.mxu0
    %v721 = vsub.f32 %v572, %v501
    %v722 = vmul.f32 %v576, %v576
    %v723 = vsub.f32 %v499, %v570
    %v724 = vmul.f32 %v723, %v723
    %v725 = vadd.f32 %v722, %v724
    %v726 = vsub.f32 0.0, %v572
    %v727 = vmul.f32 %v726, 1.442695
    %v728 = vpow.pop %v727
    %v729 = vmul.f32 %v725, %v728
    %v730 = vadd.f32 %v721, %v729
    %v731 = vsub.f32 %v730, 1.0
    %732 = vadd.xlane.f32.xlu0 %v731
    %v733 = vpop.xlane.xlu0 %732
    %v734 = vmul.f32 %v733, 0.5
    %v735 = vmax.f32 %v718, 0.0
    %v736 = vand.u32 2147483647, %v718
    %v737 = vsub.f32 0.0, %v736
    %v738 = vmul.f32 %v737, 1.442695
    %v739 = vpow.pop %v738
    %v740 = vadd.f32 %v739, 1.0
    %v741 = vlog2.pop %v740
    %v742 = vmul.f32 %v741, 0.6931472
    %v743 = vmul.f32 -0.5, %v739
    %v744 = vadd.f32 %v743, 1.0
    %v745 = vmul.f32 %v744, %v739
    %v746 = vand.u32 2147483647, %v739
    %vm747 = vcmp.lt.f32.partialorder %v746, 0.0004427343
    %v748 = vsel %vm747, %v745, %v742
    %v749 = vadd.f32 %v735, %v748
    %v750 = vlaneseq
    %v751 = vand.u32 %v750, 127
    %vm752 = vcmp.ge.s32.totalorder %v751, 8
    %vm753 = vcmp.lt.s32.totalorder %v751, 24
    %vm754 = vmand %vm752, %vm753
    %v755 = vmul.f32 %v38, %v718
    %v756 = vsub.f32 %v749, %v755
    %v757 = vsel %vm754, 1, 0
    %vm758 = vcmp.eq.s32.totalorder %v757, 1
    %v759 = vsel %vm758, %v756, 0.0
    %760 = vadd.xlane.f32.xlu0 %v759
    %v761 = vpop.xlane.xlu0 %760
    %v762 = vsub.f32 0.0, %v761
    %v763 = vsub.f32 %v762, %v734
    %764 = vst [vmem:[#allocation7] sm:$0xff] %v578
    %v765 = vxor.u32 %v718, 2147483648
    %v766 = vmul.f32 %v765, 1.442695
    %v767 = vpow.pop %v766
    %v768 = vadd.f32 %v767, 1.0
    %v769 = vrcp.pop %v768
    %v770 = vmul.f32 1.0, %v769
    %771 = vst [vmem:[#allocation7 + $0x8] sm:$0xff] %v770
    %772 = vst [vmem:[#allocation7 + $0x10] sm:$0xff] %v763
    // Predicated region
    $region18: #{tpu_custom_call.1} parent=1 // pred_check
      _
    $region19: #{tpu_custom_call.1} parent=1 // pred_check_branch
      %774 = sbr.rel (0) target = $region21
    $region20: #{tpu_custom_call.1} parent=1 // pred_region
      %s776 = ssub.s32 384, 384
      %777 = vsyncadd [#allocation4], %s776
      %s779 = sshll.u32 [#allocation7], 4
      %s780 = int_to_ptr.vmem [resolvable:$true] %s779
      %782 = dma.vmem_to_hbm [thread:$0]  %s780, 384, %s2, [#allocation4]
    $region21: #{tpu_custom_call.1} parent=1 // pred_fallthru
      _
    // Predicated region
    $region22: #{tpu_custom_call.1} parent=1 // pred_check
      _
    $region23: #{tpu_custom_call.1} parent=1 // pred_check_branch
      %784 = sbr.rel (0) target = $region25
    $region24: #{tpu_custom_call.1} parent=1 // pred_region
      %785 = dma.done [#allocation4], 384
    $region25: #{tpu_custom_call.1} parent=1 // pred_fallthru
      _
    %786 = vsyncpa [#allocation3], 1
    %787 = vsyncpa [#allocation6], 1
    %788 = vsyncpa [#allocation4], 1

</llo_original>
